<compile_context>
chip_gen: v7x
topology: tpu7x:2x2x1
jax: 0.10.0
libtpu: 0.0.40
codegen_flags: <defaults>
</compile_context>

<pallas_src>
import jax
import jax.numpy as jnp
from jax.experimental import pallas as pl
from jax.experimental.pallas import tpu as pltpu


def _soft_attention_kernel(x_ref, w1_ref, b1_ref, w2_ref, soft_ref, att_ref):
    TB, N, D = x_ref.shape          # batch tile, num views, feature
    H = w1_ref.shape[1]             # hidden size

    x = x_ref[...]                  # (TB, N, D) streaming dtype (f32 / bf16)
    w1 = w1_ref[...]                # (D, H)     matmul dtype   (f32 / bf16)
    b1 = b1_ref[...]                # (1, H) f32
    w2 = w2_ref[...]                # (1, H) f32 (the (H,1) column stored as a row)

    # ---- first linear + ReLU: one dense 2-D MXU matmul over all views -----
    # Collapsing (TB, N) -> TB*N keeps the last (lane) dim intact -> cheap.
    xf = x.reshape(TB * N, D)
    if xf.dtype != w1.dtype:
        xf = xf.astype(w1.dtype)
    h = jnp.dot(xf, w1, preferred_element_type=jnp.float32) + b1   # (TB*N, H) f32
    h = jnp.maximum(h, 0.0)

    # ---- second linear (output width 1): VPU multiply + lane reduce --------
    # Keep the result in (TB, N, 1): N stays on the sublane axis so the
    # softmax is a sublane reduce and att broadcasts straight against x.
    h3 = h.reshape(TB, N, H)
    scores = jnp.sum(h3 * w2, axis=-1, keepdims=True)              # (TB, N, 1) f32
    # "+ b2" omitted: softmax is shift invariant, so it cancels exactly.

    # ---- softmax over the N views (axis=1, sublane axis) -------------------
    m = jnp.max(scores, axis=1, keepdims=True)                     # (TB, 1, 1)
    e = jnp.exp(scores - m)
    denom = jnp.sum(e, axis=1, keepdims=True)
    att = e * pl.reciprocal(denom, approx=True)                    # EUP slot

    # ---- weighted sum over views: lane-broadcast multiply + sublane reduce -
    # (contraction depth is only N=8, MXU would be mostly drain latency)
    soft = jnp.sum(att * x.astype(jnp.float32), axis=1)            # (TB, D) f32
    soft_ref[...] = soft.astype(soft_ref.dtype)

    # att writeback is <1% of traffic; keep the module's batch-major layout.
    att_ref[...] = att[:, :, 0].astype(att_ref.dtype)


def soft_attention(inputs, w1, b1, w2, b2=None, *, block_b=1024,
                   stream_dtype=None, out_dtype=None):
    """SoftAttention forward.

    inputs       : list/tuple of N arrays (B, D), or a pre-stacked (B, N, D)
                   array (pass pre-stacked to skip the jnp.stack round trip).
    w1           : (D, H)  first linear weight, stored as (in, out)
    b1           : (H,)    first linear bias
    w2           : (H, 1)  second linear weight
    b2           : (1,)    second linear bias (ignored: cancels in the softmax)
    block_b      : upper bound on the batch tile.
    stream_dtype : e.g. jnp.bfloat16 to halve HBM read traffic (kernel is
                   memory bound); softmax / accumulation stay f32.
    out_dtype    : dtype of `soft` (defaults to the streaming dtype).
    Returns (soft (B, D), att (B, N) f32).
    """
    del b2  # mathematically redundant (softmax shift invariance)

    if isinstance(inputs, (list, tuple)):
        x = jnp.stack(inputs, axis=1)          # (B, N, D)
    else:
        x = inputs
    if stream_dtype is not None and x.dtype != stream_dtype:
        x = x.astype(stream_dtype)             # ~2x less HBM read when bf16
    B, N, D = x.shape
    H = w1.shape[1]
    out_dtype = x.dtype if out_dtype is None else out_dtype

    # bf16 matmul operands when streaming bf16 (fewer MXU passes, esp. v5e);
    # keep the f32 path exact otherwise.
    mm_dtype = jnp.bfloat16 if x.dtype == jnp.bfloat16 else jnp.float32

    x_sz = jnp.dtype(x.dtype).itemsize
    o_sz = jnp.dtype(out_dtype).itemsize

    # ---- batch tile selection ----------------------------------------------
    # Per-batch-row VMEM bytes: double-buffered x + outputs, plus the f32
    # intermediates materialized inside the kernel (att*x product, hidden acts).
    per_row = (2 * N * D * x_sz            # x tile, double buffered
               + 2 * D * o_sz              # soft tile, double buffered
               + 2 * N * 4                 # att tile, double buffered
               + N * D * 4                 # f32 att*x intermediate
               + N * H * 4)                # f32 hidden activations
    vmem_budget = 24 * 1024 * 1024
    tb_cap = max(8, (vmem_budget // per_row) // 8 * 8)

    if B <= 8:
        TB = B                              # tiny batch: one full-dim block
    else:
        TB = min(block_b, tb_cap, B)
        # v7x has 2 TensorCores: give the "parallel" grid axis >= 2 tiles.
        half_b = ((B + 1) // 2 + 7) // 8 * 8
        TB = min(TB, half_b)
        TB = max(8, (TB // 8) * 8)          # out blocks need sublane-tiled TB
    grid = (pl.cdiv(B, TB),)

    # Deeper buffering only when per-tile DMA is tiny (compute per tile is
    # trivial); default double buffering otherwise to keep VMEM for big tiles.
    x_tile_bytes = TB * N * D * x_sz
    if grid[0] > 1 and x_tile_bytes < (1 << 20):
        x_spec = pl.BlockSpec((TB, N, D), lambda i: (i, 0, 0),
                              pipeline_mode=pl.Buffered(3))
    else:
        x_spec = pl.BlockSpec((TB, N, D), lambda i: (i, 0, 0))

    soft, att = pl.pallas_call(
        _soft_attention_kernel,
        out_shape=(jax.ShapeDtypeStruct((B, D), out_dtype),
                   jax.ShapeDtypeStruct((B, N), jnp.float32)),
        grid=grid,
        in_specs=[
            x_spec,                                            # x   (streamed)
            pl.BlockSpec((D, H), lambda i: (0, 0)),            # w1  (resident)
            pl.BlockSpec((1, H), lambda i: (0, 0)),            # b1  (resident)
            pl.BlockSpec((1, H), lambda i: (0, 0)),            # w2  (resident)
        ],
        out_specs=(pl.BlockSpec((TB, D), lambda i: (i, 0)),
                   pl.BlockSpec((TB, N), lambda i: (i, 0))),
        compiler_params=pltpu.CompilerParams(
            dimension_semantics=("parallel",),                 # v7x: 2 TCs
            vmem_limit_bytes=32 * 1024 * 1024),                # raises v5e 16 MiB
    )(x,
      w1.astype(mm_dtype),
      b1.reshape(1, H).astype(jnp.float32),
      w2.reshape(1, H).astype(jnp.float32))
    return soft, att


def soft_attention_ref(inputs, w1, b1, w2, b2):
    """Pure-JAX reference mirroring the PyTorch forward (b2 kept here)."""
    x = jnp.stack(inputs, axis=1) if isinstance(inputs, (list, tuple)) else inputs
    x = x.astype(jnp.float32)
    h = jnp.maximum(jnp.einsum('bnd,dh->bnh', x, w1) + b1, 0.0)
    scores = (jnp.einsum('bnh,hk->bnk', h, w2) + b2)[:, :, 0]
    att = jax.nn.softmax(scores, axis=1)
    soft = jnp.sum(att[:, :, None] * x, axis=1)
    return soft, att


if __name__ == "__main__":
    # Small, module-consistent shapes: batch=2, views=8, input=128, hidden=32.
    B, N, D, H = 2, 8, 128, 32

    key = jax.random.PRNGKey(0)
    k_in, k_w1, k_b1, k_w2, k_b2 = jax.random.split(key, 5)

    inputs_list = [
        jax.random.normal(jax.random.fold_in(k_in, i), (B, D), jnp.float32)
        for i in range(N)
    ]
    w1 = jax.random.normal(k_w1, (D, H), jnp.float32) * 0.05
    b1 = jax.random.normal(k_b1, (H,), jnp.float32) * 0.05
    w2 = jax.random.normal(k_w2, (H, 1), jnp.float32) * 0.05
    b2 = jax.random.normal(k_b2, (1,), jnp.float32) * 0.05

    # Tolerance 2e-3 covers the EUP approximate reciprocal (~1e-4 rel. error).
    TOL = dict(atol=2e-3, rtol=2e-3)

    # --- case 1: list-of-views API, tiny batch, single-block grid -----------
    soft, att = soft_attention(inputs_list, w1, b1, w2, b2)
    jax.block_until_ready((soft, att))
    soft_r, att_r = soft_attention_ref(inputs_list, w1, b1, w2, b2)
    assert jnp.allclose(soft, soft_r, **TOL), "soft mismatch (case 1)"
    assert jnp.allclose(att, att_r, **TOL), "attention mismatch (case 1)"

    # --- case 2: pre-stacked input, multi-block batch-tiled grid ------------
    B2 = 32
    x2 = jax.random.normal(jax.random.fold_in(k_in, 99), (B2, N, D), jnp.float32)
    soft2, att2 = soft_attention(x2, w1, b1, w2, b2, block_b=8)   # grid = (4,)
    jax.block_until_ready((soft2, att2))
    soft2_r, att2_r = soft_attention_ref(x2, w1, b1, w2, b2)
    assert jnp.allclose(soft2, soft2_r, **TOL), "soft mismatch (case 2)"
    assert jnp.allclose(att2, att2_r, **TOL), "attention mismatch (case 2)"

    # --- case 3: bf16 streaming path (half the HBM traffic), auto tiling ----
    B3 = 64
    x3 = jax.random.normal(jax.random.fold_in(k_in, 123), (B3, N, D), jnp.float32)
    x3_bf = x3.astype(jnp.bfloat16)
    soft3, att3 = soft_attention(x3_bf, w1, b1, w2, b2)           # >=2 tiles (v7x)
    jax.block_until_ready((soft3, att3))
    soft3_r, att3_r = soft_attention_ref(x3_bf, w1, b1, w2, b2)
    TOL_BF16 = dict(atol=2e-2, rtol=2e-2)
    assert jnp.allclose(soft3.astype(jnp.float32), soft3_r, **TOL_BF16), \
        "soft mismatch (case 3, bf16)"
    assert jnp.allclose(att3, att3_r, **TOL_BF16), "attention mismatch (case 3, bf16)"

    print("KERNEL_OK")
</pallas_src>

<mosaic_0001>
module attributes {stable_mosaic.version = 11 : i64} {
  func.func @_soft_attention_kernel(%arg0: i32, %arg1: memref<2x8x128xf32, #tpu.memory_space<vmem>>, %arg2: memref<128x32xf32, #tpu.memory_space<vmem>>, %arg3: memref<1x32xf32, #tpu.memory_space<vmem>>, %arg4: memref<1x32xf32, #tpu.memory_space<vmem>>, %arg5: memref<2x128xf32, #tpu.memory_space<vmem>>, %arg6: memref<2x8xf32, #tpu.memory_space<vmem>>) attributes {dimension_semantics = [#tpu.dimension_semantics<parallel>], iteration_bounds = array<i64: 1>, scalar_prefetch = 0 : i64, scratch_operands = 0 : i64, tpu.core_type = #tpu.core_type<tc>, window_params = [{transform_indices = @transform_0, window_bounds = array<i64: 2, 8, 128>}, {pipeline_mode = #tpu.pipeline_mode<synchronous>, transform_indices = @transform_1, window_bounds = array<i64: 128, 32>}, {pipeline_mode = #tpu.pipeline_mode<synchronous>, transform_indices = @transform_2, window_bounds = array<i64: 1, 32>}, {pipeline_mode = #tpu.pipeline_mode<synchronous>, transform_indices = @transform_3, window_bounds = array<i64: 1, 32>}, {transform_indices = @transform_4, window_bounds = array<i64: 2, 128>}, {transform_indices = @transform_5, window_bounds = array<i64: 2, 8>}]} {
    %c0 = arith.constant 0 : index
    %c0_0 = arith.constant 0 : index
    %c0_1 = arith.constant 0 : index
    %0 = vector.load %arg1[%c0, %c0_0, %c0_1] : memref<2x8x128xf32, #tpu.memory_space<vmem>>, vector<2x8x128xf32>
    %c0_2 = arith.constant 0 : index
    %c0_3 = arith.constant 0 : index
    %1 = vector.load %arg2[%c0_2, %c0_3] : memref<128x32xf32, #tpu.memory_space<vmem>>, vector<128x32xf32>
    %c0_4 = arith.constant 0 : index
    %c0_5 = arith.constant 0 : index
    %2 = vector.load %arg3[%c0_4, %c0_5] : memref<1x32xf32, #tpu.memory_space<vmem>>, vector<1x32xf32>
    %c0_6 = arith.constant 0 : index
    %c0_7 = arith.constant 0 : index
    %3 = vector.load %arg4[%c0_6, %c0_7] : memref<1x32xf32, #tpu.memory_space<vmem>>, vector<1x32xf32>
    %4 = vector.shape_cast %0 : vector<2x8x128xf32> to vector<16x128xf32>
    %cst = arith.constant dense<0.000000e+00> : vector<16x32xf32>
    %5 = tpu.matmul %4, %1, %cst {dimension_numbers = #tpu.dot_dimension_numbers<[1], [0], [0], [1], [0, 0, 1, 1], [], []>} : vector<16x128xf32>, vector<128x32xf32>, vector<16x32xf32> -> vector<16x32xf32>
    %6 = vector.broadcast %2 : vector<1x32xf32> to vector<16x32xf32>
    %7 = arith.addf %5, %6 : vector<16x32xf32>
    %cst_8 = arith.constant 0.000000e+00 : f32
    %8 = vector.broadcast %cst_8 : f32 to vector<16x32xf32>
    %9 = arith.maximumf %7, %8 : vector<16x32xf32>
    %10 = vector.shape_cast %9 : vector<16x32xf32> to vector<2x8x32xf32>
    %11 = vector.shape_cast %3 : vector<1x32xf32> to vector<1x1x32xf32>
    %12 = vector.broadcast %11 : vector<1x1x32xf32> to vector<2x8x32xf32>
    %13 = arith.mulf %10, %12 : vector<2x8x32xf32>
    %cst_9 = arith.constant dense<0.000000e+00> : vector<2x8xf32>
    %14 = vector.multi_reduction <add>, %13, %cst_9 [2] : vector<2x8x32xf32> to vector<2x8xf32>
    %15 = vector.shape_cast %14 : vector<2x8xf32> to vector<2x8x1xf32>
    %cst_10 = arith.constant dense<0xFF800000> : vector<2x1xf32>
    %16 = vector.multi_reduction <maximumf>, %15, %cst_10 [1] : vector<2x8x1xf32> to vector<2x1xf32>
    %17 = vector.shape_cast %16 : vector<2x1xf32> to vector<2x1x1xf32>
    %18 = vector.broadcast %17 : vector<2x1x1xf32> to vector<2x8x1xf32>
    %19 = arith.subf %15, %18 : vector<2x8x1xf32>
    %20 = math.exp %19 : vector<2x8x1xf32>
    %cst_11 = arith.constant dense<0.000000e+00> : vector<2x1xf32>
    %21 = vector.multi_reduction <add>, %20, %cst_11 [1] : vector<2x8x1xf32> to vector<2x1xf32>
    %22 = vector.shape_cast %21 : vector<2x1xf32> to vector<2x1x1xf32>
    %23 = tpu.reciprocal %22 {approx = true} : vector<2x1x1xf32> -> vector<2x1x1xf32>
    %24 = vector.broadcast %23 : vector<2x1x1xf32> to vector<2x8x1xf32>
    %25 = arith.mulf %20, %24 : vector<2x8x1xf32>
    %26 = vector.broadcast %25 : vector<2x8x1xf32> to vector<2x8x128xf32>
    %27 = arith.mulf %26, %0 : vector<2x8x128xf32>
    %cst_12 = arith.constant dense<0.000000e+00> : vector<2x128xf32>
    %28 = vector.multi_reduction <add>, %27, %cst_12 [1] : vector<2x8x128xf32> to vector<2x128xf32>
    %c0_13 = arith.constant 0 : index
    %c0_14 = arith.constant 0 : index
    %29 = vector.load %arg5[%c0_13, %c0_14] : memref<2x128xf32, #tpu.memory_space<vmem>>, vector<2x128xf32>
    tpu.vector_store %arg5[%c0_13, %c0_14], %28 {strides = array<i32>} : memref<2x128xf32, #tpu.memory_space<vmem>>, vector<2x128xf32>,
    %30 = vector.shape_cast %25 : vector<2x8x1xf32> to vector<2x8xf32>
    %c0_15 = arith.constant 0 : index
    %c0_16 = arith.constant 0 : index
    %31 = vector.load %arg6[%c0_15, %c0_16] : memref<2x8xf32, #tpu.memory_space<vmem>>, vector<2x8xf32>
    tpu.vector_store %arg6[%c0_15, %c0_16], %30 {strides = array<i32>} : memref<2x8xf32, #tpu.memory_space<vmem>>, vector<2x8xf32>,
    return
  }
  func.func @transform_0(%arg0: i32) -> (i32, i32, i32) {
    %c0_i32 = arith.constant 0 : i32
    %c0_i32_0 = arith.constant 0 : i32
    %c0_i32_1 = arith.constant 0 : i32
    return %arg0, %c0_i32, %c0_i32_0 : i32, i32, i32
  }
  func.func @transform_1(%arg0: i32) -> (i32, i32) {
    %c0_i32 = arith.constant 0 : i32
    %c0_i32_0 = arith.constant 0 : i32
    %c0_i32_1 = arith.constant 0 : i32
    return %c0_i32, %c0_i32_0 : i32, i32
  }
  func.func @transform_2(%arg0: i32) -> (i32, i32) {
    %c0_i32 = arith.constant 0 : i32
    %c0_i32_0 = arith.constant 0 : i32
    %c0_i32_1 = arith.constant 0 : i32
    return %c0_i32, %c0_i32_0 : i32, i32
  }
  func.func @transform_3(%arg0: i32) -> (i32, i32) {
    %c0_i32 = arith.constant 0 : i32
    %c0_i32_0 = arith.constant 0 : i32
    %c0_i32_1 = arith.constant 0 : i32
    return %c0_i32, %c0_i32_0 : i32, i32
  }
  func.func @transform_4(%arg0: i32) -> (i32, i32) {
    %c0_i32 = arith.constant 0 : i32
    %c0_i32_0 = arith.constant 0 : i32
    return %arg0, %c0_i32 : i32, i32
  }
  func.func @transform_5(%arg0: i32) -> (i32, i32) {
    %c0_i32 = arith.constant 0 : i32
    %c0_i32_0 = arith.constant 0 : i32
    return %arg0, %c0_i32 : i32, i32
  }
}

</mosaic_0001>

<llo_original>
// kernel: tpu_custom_call.1
$region0: #{tpu_custom_call.1}
  #allocation0 [shape = 'u32[]', space=smem, size = 0x4, offset = 0x4, fixed_abs, tag = 'smem constant byte address 0x4 - core index']
  #allocation1 [shape = 'u32[144,128]{1,0:T(1,128)}', space=vmem, size = 0x12000, scoped, tag = 'internal scratch']
  %s0 = inlined_call_operand.vmem [shape: f32[2,8,128], index: 0, kind: input, shape index: {}]
  %s1 = inlined_call_operand.vmem [shape: f32[128,32], index: 1, kind: input, shape index: {}]
  %s2 = inlined_call_operand.vmem [shape: f32[1,32], index: 2, kind: input, shape index: {}]
  %s3 = inlined_call_operand.vmem [shape: f32[1,32], index: 3, kind: input, shape index: {}]
  %s4 = inlined_call_operand.hbm [shape: f32[2,128], index: 4, kind: output, shape index: {0}]
  %s5 = inlined_call_operand.hbm [shape: f32[2,8], index: 5, kind: output, shape index: {1}]
  %6 = xla_tuple %s4, %s5
  %s7 = sld [smem:[#allocation0]]
  $region34: #{tpu_custom_call.1} parent=0
    _
  %s9 = ssub.s32 1, %s7
  %s10 = scalar_select 0, %s9, %s7
  $region1: #{tpu_custom_call.1} parent=0
    #allocation2 [shape = 'u8[1024]{0}', space=vmem, size = 0x400, scoped, tag = 'output window, operand 0, single buffered']
    #allocation3 [shape = 's32[1]{0}', space=sflag, size = 0x4, scoped, tag = 'scoped memory for tpu_custom_call.1']
    #allocation4 [shape = 'u8[1024]{0}', space=vmem, size = 0x400, scoped, tag = 'output window, operand 1, single buffered']
    #allocation5 [shape = 's32[1]{0}', space=sflag, size = 0x4, scoped, tag = 'scoped memory for tpu_custom_call.1']
    %11 = vsyncpa [#allocation3], 0
    %12 = vsyncpa [#allocation5], 0
    // Predicated region
    $region2: #{tpu_custom_call.1} parent=1 // pred_check
      _
    $region3: #{tpu_custom_call.1} parent=1 // pred_check_branch
      %14 = sbr.rel (0) target = $region5
    $region4: #{tpu_custom_call.1} parent=1 // pred_region
      _
    $region5: #{tpu_custom_call.1} parent=1 // pred_fallthru
      _
    // Predicated region
    $region6: #{tpu_custom_call.1} parent=1 // pred_check
      _
    $region7: #{tpu_custom_call.1} parent=1 // pred_check_branch
      %16 = sbr.rel (0) target = $region9
    $region8: #{tpu_custom_call.1} parent=1 // pred_region
      _
    $region9: #{tpu_custom_call.1} parent=1 // pred_fallthru
      _
    // Predicated region
    $region10: #{tpu_custom_call.1} parent=1 // pred_check
      _
    $region11: #{tpu_custom_call.1} parent=1 // pred_check_branch
      %18 = sbr.rel (0) target = $region13
    $region12: #{tpu_custom_call.1} parent=1 // pred_region
      _
    $region13: #{tpu_custom_call.1} parent=1 // pred_fallthru
      _
    // Predicated region
    $region14: #{tpu_custom_call.1} parent=1 // pred_check
      _
    $region15: #{tpu_custom_call.1} parent=1 // pred_check_branch
      %20 = sbr.rel (0) target = $region17
    $region16: #{tpu_custom_call.1} parent=1 // pred_region
      _
    $region17: #{tpu_custom_call.1} parent=1 // pred_fallthru
      _
    %v21 = vld [vmem:[%s0] sm:$0xff]
    %v22 = vld [vmem:[%s0 + $0x8] sm:$0xff]
    %v23 = vld [vmem:[%s1] sm:$0xff]
    %v24 = vld [vmem:[%s1 + $0x8] sm:$0xff]
    %v25 = vld [vmem:[%s1 + $0x10] sm:$0xff]
    %v26 = vld [vmem:[%s1 + $0x18] sm:$0xff]
    %v27 = vld [vmem:[%s1 + $0x20] sm:$0xff]
    %v28 = vld [vmem:[%s1 + $0x28] sm:$0xff]
    %v29 = vld [vmem:[%s1 + $0x30] sm:$0xff]
    %v30 = vld [vmem:[%s1 + $0x38] sm:$0xff]
    %v31 = vld [vmem:[%s1 + $0x40] sm:$0xff]
    %v32 = vld [vmem:[%s1 + $0x48] sm:$0xff]
    %v33 = vld [vmem:[%s1 + $0x50] sm:$0xff]
    %v34 = vld [vmem:[%s1 + $0x58] sm:$0xff]
    %v35 = vld [vmem:[%s1 + $0x60] sm:$0xff]
    %v36 = vld [vmem:[%s1 + $0x68] sm:$0xff]
    %v37 = vld [vmem:[%s1 + $0x70] sm:$0xff]
    %v38 = vld [vmem:[%s1 + $0x78] sm:$0xff]
    %v39 = vld [vmem:[%s2] sm:$0x1]
    %v40 = vld [vmem:[%s3] sm:$0x1]
    %v42 = vlaneseq
    %v43 = vshrl.u32 %v42, 7
    %v44 = vsub.s32 0, %v43
    %v45 = vrot.slane %v39, %v44
    %47 = vmatprep.subr.mxu0 0.0
    %48 = vmatpush1.msra.mxu0 %v23
    %49 = vmatprep.subr.mxu0 0.0
    %50 = vmatpush1.msra.mxu0 %v24
    %51 = vmatprep.subr.mxu0 0.0
    %52 = vmatpush1.msra.mxu0 %v25
    %53 = vmatprep.subr.mxu0 0.0
    %54 = vmatpush1.msra.mxu0 %v26
    %55 = vmatprep.subr.mxu0 0.0
    %56 = vmatpush1.msra.mxu0 %v27
    %57 = vmatprep.subr.mxu0 0.0
    %58 = vmatpush1.msra.mxu0 %v28
    %59 = vmatprep.subr.mxu0 0.0
    %60 = vmatpush1.msra.mxu0 %v29
    %61 = vmatprep.subr.mxu0 0.0
    %62 = vmatpush1.msra.mxu0 %v30
    %63 = vmatprep.subr.mxu0 0.0
    %64 = vmatpush1.msra.mxu0 %v31
    %65 = vmatprep.subr.mxu0 0.0
    %66 = vmatpush1.msra.mxu0 %v32
    %67 = vmatprep.subr.mxu0 0.0
    %68 = vmatpush1.msra.mxu0 %v33
    %69 = vmatprep.subr.mxu0 0.0
    %70 = vmatpush1.msra.mxu0 %v34
    %71 = vmatprep.subr.mxu0 0.0
    %72 = vmatpush1.msra.mxu0 %v35
    %73 = vmatprep.subr.mxu0 0.0
    %74 = vmatpush1.msra.mxu0 %v36
    %75 = vmatprep.subr.mxu0 0.0
    %76 = vmatpush1.msra.mxu0 %v37
    %77 = vmatprep.subr.mxu0 0.0
    %78 = vmatpush1.msra.mxu0 %v38
    %79 = vmatprep.subr.mxu0 0.0
    %80 = vmatpush1.msra.mxu0 0.0
    %81 = vmatprep.subr.mxu0 0.0
    %82 = vmatpush1.msra.mxu0 0.0
    %83 = vmatprep.subr.mxu0 0.0
    %84 = vmatpush1.msra.mxu0 0.0
    %85 = vmatprep.subr.mxu0 0.0
    %86 = vmatpush1.msra.mxu0 0.0
    %87 = vmatprep.subr.mxu0 0.0
    %88 = vmatpush1.msra.mxu0 0.0
    %89 = vmatprep.subr.mxu0 0.0
    %90 = vmatpush1.msra.mxu0 0.0
    %91 = vmatprep.subr.mxu0 0.0
    %92 = vmatpush1.msra.mxu0 0.0
    %93 = vmatprep.subr.mxu0 0.0
    %94 = vmatpush1.msra.mxu0 0.0
    %95 = vmatprep.subr.mxu0 0.0
    %96 = vmatpush1.msra.mxu0 0.0
    %97 = vmatprep.subr.mxu0 0.0
    %98 = vmatpush1.msra.mxu0 0.0
    %99 = vmatprep.subr.mxu0 0.0
    %100 = vmatpush1.msra.mxu0 0.0
    %101 = vmatprep.subr.mxu0 0.0
    %102 = vmatpush1.msra.mxu0 0.0
    %103 = vmatprep.subr.mxu0 0.0
    %104 = vmatpush1.msra.mxu0 0.0
    %105 = vmatprep.subr.mxu0 0.0
    %106 = vmatpush1.msra.mxu0 0.0
    %107 = vmatprep.subr.mxu0 0.0
    %108 = vmatpush1.msra.mxu0 0.0
    %109 = vmatprep.subr.mxu0 0.0
    %110 = vmatpush1.msra.mxu0 0.0
    %111 = vmatprep.mubr.f32.mxu0 0.0
    %112 = vmatmul.mubr.f32.gmra.mrb[0].mxu0 %v21
    %v113 = vpop.f32.mrb[0].mxu0
    %v114 = vadd.f32 %v45, %v113
    %v115 = vpop.f32.mrb[0].mxu0
    %116 = vmatprep.mubr.f32.mxu0 0.0
    %117 = vmatmul.mubr.f32.gmra.mrb[0].mxu0 %v22
    %v118 = vpop.f32.mrb[0].mxu0
    %v119 = vadd.f32 %v45, %v118
    %v120 = vpop.f32.mrb[0].mxu0
    %121 = vdwg.mxu0
    %v122 = vmax.f32 %v114, 0.0
    %v123 = vmax.f32 %v119, 0.0
    %v125 = vlaneseq
    %v126 = vshrl.u32 %v125, 7
    %v127 = vsub.s32 0, %v126
    %v128 = vrot.slane %v40, %v127
    %v130 = vmul.f32 %v122, %v128
    %v131 = vmul.f32 %v123, %v128
    %vm132 = vcmask 261120
    %v133 = vsel %vm132, %v130, 0.0
    %134 = vadd.xlane.f32.xlu0 %v133
    %v135 = vpop.xlane.xlu0 %134
    %v136 = vsel %vm132, %v131, 0.0
    %137 = vadd.xlane.f32.xlu0 %v136
    %v138 = vpop.xlane.xlu0 %137
    %v139 = vrot.slane %v135, 4
    %v140 = vmax.f32 %v135, %v139
    %v141 = vrot.slane %v140, 2
    %v142 = vmax.f32 %v140, %v141
    %v143 = vrot.slane %v142, 1
    %v144 = vmax.f32 %v142, %v143
    %v145 = vrot.slane %v138, 4
    %v146 = vmax.f32 %v138, %v145
    %v147 = vrot.slane %v146, 2
    %v148 = vmax.f32 %v146, %v147
    %v149 = vrot.slane %v148, 1
    %v150 = vmax.f32 %v148, %v149
    %v151 = vsub.f32 %v135, %v144
    %v152 = vsub.f32 %v138, %v150
    %v153 = vmul.f32 %v151, 1.442695
    %v154 = vpow.pop %v153
    %v155 = vmul.f32 %v152, 1.442695
    %v156 = vpow.pop %v155
    %v157 = vrot.slane %v154, 4
    %v158 = vadd.f32 %v154, %v157
    %v159 = vrot.slane %v158, 2
    %v160 = vadd.f32 %v158, %v159
    %v161 = vrot.slane %v160, 1
    %v162 = vadd.f32 %v160, %v161
    %v163 = vrot.slane %v156, 4
    %v164 = vadd.f32 %v156, %v163
    %v165 = vrot.slane %v164, 2
    %v166 = vadd.f32 %v164, %v165
    %v167 = vrot.slane %v166, 1
    %v168 = vadd.f32 %v166, %v167
    %v169 = vrcp.pop %v162
    %v170 = vrcp.pop %v168
    %v171 = vmul.f32 %v154, %v169
    %v172 = vmul.f32 %v156, %v170
    %v173 = vmul.f32 %v171, %v21
    %v174 = vmul.f32 %v172, %v22
    %v175 = vrot.slane %v173, 4
    %v176 = vadd.f32 %v173, %v175
    %v177 = vrot.slane %v176, 2
    %v178 = vadd.f32 %v176, %v177
    %v179 = vrot.slane %v178, 1
    %v180 = vadd.f32 %v178, %v179
    %v181 = vrot.slane %v174, 4
    %v182 = vadd.f32 %v174, %v181
    %v183 = vrot.slane %v182, 2
    %v184 = vadd.f32 %v182, %v183
    %v185 = vrot.slane %v184, 1
    %v186 = vadd.f32 %v184, %v185
    %vm189 = vcmask 1041409
    %v190 = vsel %vm189, %v186, %v180
    %192 = vst [vmem:[#allocation2] sm:$0x3] %v190
    %v195 = vlaneseq
    %v196 = vand.u32 %v195, 127
    %v197 = vlaneseq
    %v198 = vshrl.u32 %v197, 7
    %v199 = vsub.s32 %v196, %v198
    %v200 = vrot.slane %v171, %v199
    %v201 = vlaneseq
    %v202 = vshrl.u32 %v201, 7
    %v203 = vsub.s32 %v196, %v202
    %v204 = vrot.slane %v172, %v203
    %v205 = vsel %vm189, %v204, %v200
    %vm207 = vcmask 58368
    %208 = vst.msk [vmem:[#allocation4] sm:$0x3] %vm207, %v205
    // Predicated region
    $region18: #{tpu_custom_call.1} parent=1 // pred_check
      _
    $region19: #{tpu_custom_call.1} parent=1 // pred_check_branch
      %210 = sbr.rel (0) target = $region21
    $region20: #{tpu_custom_call.1} parent=1 // pred_region
      %s212 = ssub.s32 32, 32
      %213 = vsyncadd [#allocation3], %s212
      %s215 = sshll.u32 [#allocation2], 4
      %s216 = int_to_ptr.vmem [resolvable:$true] %s215
      %218 = dma.vmem_to_hbm [thread:$0]  %s216, 32, %s4, [#allocation3]
    $region21: #{tpu_custom_call.1} parent=1 // pred_fallthru
      _
    // Predicated region
    $region22: #{tpu_custom_call.1} parent=1 // pred_check
      _
    $region23: #{tpu_custom_call.1} parent=1 // pred_check_branch
      %220 = sbr.rel (0) target = $region25
    $region24: #{tpu_custom_call.1} parent=1 // pred_region
      %s222 = ssub.s32 32, 32
      %223 = vsyncadd [#allocation5], %s222
      %s225 = sshll.u32 [#allocation4], 4
      %s226 = int_to_ptr.vmem [resolvable:$true] %s225
      %228 = dma.vmem_to_hbm [thread:$0]  %s226, 32, %s5, [#allocation5]
    $region25: #{tpu_custom_call.1} parent=1 // pred_fallthru
      _
    // Predicated region
    $region26: #{tpu_custom_call.1} parent=1 // pred_check
      _
    $region27: #{tpu_custom_call.1} parent=1 // pred_check_branch
      %230 = sbr.rel (0) target = $region29
    $region28: #{tpu_custom_call.1} parent=1 // pred_region
      %231 = dma.done [#allocation3], 32
    $region29: #{tpu_custom_call.1} parent=1 // pred_fallthru
      _
    // Predicated region
    $region30: #{tpu_custom_call.1} parent=1 // pred_check
      _
    $region31: #{tpu_custom_call.1} parent=1 // pred_check_branch
      %233 = sbr.rel (0) target = $region33
    $region32: #{tpu_custom_call.1} parent=1 // pred_region
      %234 = dma.done [#allocation5], 32
    $region33: #{tpu_custom_call.1} parent=1 // pred_fallthru
      _
    %235 = vsyncpa [#allocation3], 1
    %236 = vsyncpa [#allocation5], 1

</llo_original>
